<compile_context>
chip_gen: v7x
topology: tpu7x:2x2x1
jax: 0.10.0
libtpu: 0.0.40
codegen_flags: <defaults>
</compile_context>

<pallas_src>
import functools

import jax
import jax.numpy as jnp
from jax.experimental import pallas as pl
from jax.experimental.pallas import tpu as pltpu


# ----------------------------------------------------------------------------
# Kernel
# ----------------------------------------------------------------------------
def _head_attn_kernel(x_q_ref, x_kv_ref, wq_ref, wk_ref, wv_ref, o_ref,
                      q_sc, m_sc, l_sc, acc_sc, *, scale, block_q, block_k):
    qi = pl.program_id(1)
    ki = pl.program_id(2)
    nk = pl.num_programs(2)

    q_start = qi * block_q
    k_start = ki * block_k

    @pl.when(ki == 0)
    def _init():
        # Q projection for this query tile; computed once, reused for all
        # K/V tiles.  bf16 MXU inputs, f32 accumulation, scale fused in.
        x_q = x_q_ref[0].astype(jnp.bfloat16)                     # (bq, C)
        q = jax.lax.dot_general(
            x_q, wq_ref[...].astype(jnp.bfloat16),
            dimension_numbers=(((1,), (0,)), ((), ())),
            preferred_element_type=jnp.float32)                   # (bq, hs)
        q_sc[...] = q * scale
        m_sc[...] = jnp.full(m_sc.shape, -jnp.inf, dtype=jnp.float32)
        l_sc[...] = jnp.zeros(l_sc.shape, jnp.float32)
        acc_sc[...] = jnp.zeros(acc_sc.shape, jnp.float32)

    # Skip K/V tiles that lie entirely above the causal diagonal
    # (their contribution is exactly zero).
    @pl.when(k_start <= q_start + block_q - 1)
    def _compute():
        x_kv = x_kv_ref[0].astype(jnp.bfloat16)                   # (bk, C)
        k = jax.lax.dot_general(
            x_kv, wk_ref[...].astype(jnp.bfloat16),
            dimension_numbers=(((1,), (0,)), ((), ())),
            preferred_element_type=jnp.float32)                   # (bk, hs)
        v = jax.lax.dot_general(
            x_kv, wv_ref[...].astype(jnp.bfloat16),
            dimension_numbers=(((1,), (0,)), ((), ())),
            preferred_element_type=jnp.float32)                   # (bk, hs)

        # Scores: contract on the head dim directly (no k.T / XLU transpose).
        s = jax.lax.dot_general(
            q_sc[...].astype(jnp.bfloat16), k.astype(jnp.bfloat16),
            dimension_numbers=(((1,), (1,)), ((), ())),
            preferred_element_type=jnp.float32)                   # (bq, bk)

        # Causal mask with global row/col offsets.
        row = q_start + jax.lax.broadcasted_iota(jnp.int32, s.shape, 0)
        col = k_start + jax.lax.broadcasted_iota(jnp.int32, s.shape, 1)
        s = jnp.where(col <= row, s, -jnp.inf)

        # Online softmax update (f32).
        m_prev = m_sc[...]
        m_new = jnp.maximum(m_prev, jnp.max(s, axis=-1, keepdims=True))
        alpha = jnp.exp(m_prev - m_new)
        p = jnp.exp(s - m_new)
        l_sc[...] = alpha * l_sc[...] + jnp.sum(p, axis=-1, keepdims=True)
        acc_sc[...] = alpha * acc_sc[...] + jax.lax.dot_general(
            p.astype(jnp.bfloat16), v.astype(jnp.bfloat16),
            dimension_numbers=(((1,), (0,)), ((), ())),
            preferred_element_type=jnp.float32)
        m_sc[...] = m_new

    @pl.when(ki == nk - 1)
    def _finalize():
        inv_l = pl.reciprocal(l_sc[...], approx=True)             # EUP slot
        o_ref[0] = (acc_sc[...] * inv_l).astype(o_ref.dtype)


# ----------------------------------------------------------------------------
# Wrapper
# ----------------------------------------------------------------------------
def head_attention(x, wq, wk, wv, *, block_q=None, block_k=None):
    """Forward pass of `Head` for x:(B,T,C), weights:(C,head_size)."""
    B, T, C = x.shape
    hs = wq.shape[1]
    if block_q is None:
        block_q = min(T, 128)
    if block_k is None:
        block_k = min(T, 128)
    assert T % block_q == 0 and T % block_k == 0, "T must be tile-divisible"

    scale = C ** (-0.5)  # NB: matches the reference module (n_embed**-0.5)
    grid = (B, T // block_q, T // block_k)

    return pl.pallas_call(
        functools.partial(_head_attn_kernel, scale=scale,
                          block_q=block_q, block_k=block_k),
        out_shape=jax.ShapeDtypeStruct((B, T, hs), jnp.float32),
        grid_spec=pltpu.PrefetchScalarGridSpec(
            num_scalar_prefetch=0,
            grid=grid,
            in_specs=[
                # x viewed as query tiles and as key/value tiles.
                pl.BlockSpec((1, block_q, C), lambda b, qi, ki: (b, qi, 0)),
                pl.BlockSpec((1, block_k, C), lambda b, qi, ki: (b, ki, 0)),
                pl.BlockSpec((C, hs), lambda b, qi, ki: (0, 0)),
                pl.BlockSpec((C, hs), lambda b, qi, ki: (0, 0)),
                pl.BlockSpec((C, hs), lambda b, qi, ki: (0, 0)),
            ],
            out_specs=pl.BlockSpec((1, block_q, hs),
                                   lambda b, qi, ki: (b, qi, 0)),
            scratch_shapes=[
                pltpu.VMEM((block_q, hs), jnp.float32),   # cached Q * scale
                pltpu.VMEM((block_q, 1), jnp.float32),    # running max m
                pltpu.VMEM((block_q, 1), jnp.float32),    # running sum l
                pltpu.VMEM((block_q, hs), jnp.float32),   # output accumulator
            ],
        ),
        compiler_params=pltpu.CompilerParams(
            dimension_semantics=("parallel", "parallel", "arbitrary")),
    )(x, x, wq, wk, wv)


# ----------------------------------------------------------------------------
# Pure-JAX reference (for validation)
# ----------------------------------------------------------------------------
def head_reference(x, wq, wk, wv):
    B, T, C = x.shape
    q = x @ wq
    k = x @ wk
    v = x @ wv
    wei = jnp.einsum("btd,bsd->bts", q, k) * C ** (-0.5)
    mask = jnp.tril(jnp.ones((T, T), dtype=bool))
    wei = jnp.where(mask[None], wei, -jnp.inf)
    p = jax.nn.softmax(wei, axis=-1)
    return jnp.einsum("bts,bsd->btd", p, v)


# ----------------------------------------------------------------------------
# main
# ----------------------------------------------------------------------------
if __name__ == "__main__":
    B, T, C, head_size = 2, 16, 32, 16          # block_size = T = 16
    block_q = block_k = 8                       # exercises multi-tile grid

    key = jax.random.PRNGKey(0)
    kx, kq, kk, kv = jax.random.split(key, 4)
    x = jax.random.normal(kx, (B, T, C), dtype=jnp.float32)
    wq = 0.02 * jax.random.normal(kq, (C, head_size), dtype=jnp.float32)
    wk = 0.02 * jax.random.normal(kk, (C, head_size), dtype=jnp.float32)
    wv = 0.02 * jax.random.normal(kv, (C, head_size), dtype=jnp.float32)

    out = head_attention(x, wq, wk, wv, block_q=block_q, block_k=block_k)
    out = jax.block_until_ready(out)

    ref = head_reference(x, wq, wk, wv)
    assert out.shape == (B, T, head_size)
    assert bool(jnp.all(jnp.isfinite(out)))
    max_err = float(jnp.max(jnp.abs(out - ref)))
    assert max_err < 5e-2, f"max abs error {max_err}"
    print("KERNEL_OK")
</pallas_src>

<mosaic_0001>
module attributes {stable_mosaic.version = 11 : i64} {
  func.func @_head_attn_kernel(%arg0: i32, %arg1: i32, %arg2: i32, %arg3: memref<1x8x32xf32, #tpu.memory_space<vmem>>, %arg4: memref<1x8x32xf32, #tpu.memory_space<vmem>>, %arg5: memref<32x16xf32, #tpu.memory_space<vmem>>, %arg6: memref<32x16xf32, #tpu.memory_space<vmem>>, %arg7: memref<32x16xf32, #tpu.memory_space<vmem>>, %arg8: memref<1x8x16xf32, #tpu.memory_space<vmem>>, %arg9: memref<8x16xf32, #tpu.memory_space<vmem>>, %arg10: memref<8x1xf32, #tpu.memory_space<vmem>>, %arg11: memref<8x1xf32, #tpu.memory_space<vmem>>, %arg12: memref<8x16xf32, #tpu.memory_space<vmem>>) attributes {dimension_semantics = [#tpu.dimension_semantics<parallel>, #tpu.dimension_semantics<parallel>, #tpu.dimension_semantics<arbitrary>], iteration_bounds = array<i64: 2, 2, 2>, scalar_prefetch = 0 : i64, scratch_operands = 4 : i64, tpu.core_type = #tpu.core_type<tc>, window_params = [{transform_indices = @transform_0, window_bounds = array<i64: 1, 8, 32>}, {transform_indices = @transform_1, window_bounds = array<i64: 1, 8, 32>}, {pipeline_mode = #tpu.pipeline_mode<synchronous>, transform_indices = @transform_2, window_bounds = array<i64: 32, 16>}, {pipeline_mode = #tpu.pipeline_mode<synchronous>, transform_indices = @transform_3, window_bounds = array<i64: 32, 16>}, {pipeline_mode = #tpu.pipeline_mode<synchronous>, transform_indices = @transform_4, window_bounds = array<i64: 32, 16>}, {transform_indices = @transform_5, window_bounds = array<i64: 1, 8, 16>}]} {
    %c8_i32 = arith.constant 8 : i32
    %0 = arith.muli %arg1, %c8_i32 : i32
    %c8_i32_0 = arith.constant 8 : i32
    %1 = arith.muli %arg2, %c8_i32_0 : i32
    %c0_i32 = arith.constant 0 : i32
    %2 = arith.cmpi eq, %arg2, %c0_i32 : i32
    %3 = arith.extui %2 : i1 to i32
    %c0_i32_1 = arith.constant 0 : i32
    %4 = arith.cmpi ne, %3, %c0_i32_1 : i32
    scf.if %4 {
      %c0 = arith.constant 0 : index
      %c0_6 = arith.constant 0 : index
      %c0_7 = arith.constant 0 : index
      %13 = vector.load %arg3[%c0, %c0_6, %c0_7] : memref<1x8x32xf32, #tpu.memory_space<vmem>>, vector<1x8x32xf32>
      %14 = vector.shape_cast %13 : vector<1x8x32xf32> to vector<8x32xf32>
      %15 = arith.truncf %14 : vector<8x32xf32> to vector<8x32xbf16>
      %c0_8 = arith.constant 0 : index
      %c0_9 = arith.constant 0 : index
      %16 = vector.load %arg5[%c0_8, %c0_9] : memref<32x16xf32, #tpu.memory_space<vmem>>, vector<32x16xf32>
      %17 = arith.truncf %16 : vector<32x16xf32> to vector<32x16xbf16>
      %cst = arith.constant dense<0.000000e+00> : vector<8x16xf32>
      %18 = tpu.matmul %15, %17, %cst {dimension_numbers = #tpu.dot_dimension_numbers<[1], [0], [0], [1], [0, 0, 1, 1], [], []>} : vector<8x32xbf16>, vector<32x16xbf16>, vector<8x16xf32> -> vector<8x16xf32>
      %cst_10 = arith.constant 0.176776692 : f32
      %19 = vector.broadcast %cst_10 : f32 to vector<8x16xf32>
      %20 = arith.mulf %18, %19 : vector<8x16xf32>
      %c0_11 = arith.constant 0 : index
      %c0_12 = arith.constant 0 : index
      %21 = vector.load %arg9[%c0_11, %c0_12] : memref<8x16xf32, #tpu.memory_space<vmem>>, vector<8x16xf32>
      tpu.vector_store %arg9[%c0_11, %c0_12], %20 {strides = array<i32>} : memref<8x16xf32, #tpu.memory_space<vmem>>, vector<8x16xf32>,
      %cst_13 = arith.constant 0xFF800000 : f32
      %22 = vector.broadcast %cst_13 : f32 to vector<8x1xf32>
      %c0_14 = arith.constant 0 : index
      %c0_15 = arith.constant 0 : index
      %23 = vector.load %arg10[%c0_14, %c0_15] : memref<8x1xf32, #tpu.memory_space<vmem>>, vector<8x1xf32>
      tpu.vector_store %arg10[%c0_14, %c0_15], %22 {strides = array<i32>} : memref<8x1xf32, #tpu.memory_space<vmem>>, vector<8x1xf32>,
      %cst_16 = arith.constant 0.000000e+00 : f32
      %24 = vector.broadcast %cst_16 : f32 to vector<8x1xf32>
      %c0_17 = arith.constant 0 : index
      %c0_18 = arith.constant 0 : index
      %25 = vector.load %arg11[%c0_17, %c0_18] : memref<8x1xf32, #tpu.memory_space<vmem>>, vector<8x1xf32>
      tpu.vector_store %arg11[%c0_17, %c0_18], %24 {strides = array<i32>} : memref<8x1xf32, #tpu.memory_space<vmem>>, vector<8x1xf32>,
      %cst_19 = arith.constant 0.000000e+00 : f32
      %26 = vector.broadcast %cst_19 : f32 to vector<8x16xf32>
      %c0_20 = arith.constant 0 : index
      %c0_21 = arith.constant 0 : index
      %27 = vector.load %arg12[%c0_20, %c0_21] : memref<8x16xf32, #tpu.memory_space<vmem>>, vector<8x16xf32>
      tpu.vector_store %arg12[%c0_20, %c0_21], %26 {strides = array<i32>} : memref<8x16xf32, #tpu.memory_space<vmem>>, vector<8x16xf32>,
    } else {
    }
    %c8_i32_2 = arith.constant 8 : i32
    %5 = arith.addi %0, %c8_i32_2 : i32
    %c1_i32 = arith.constant 1 : i32
    %6 = arith.subi %5, %c1_i32 : i32
    %7 = arith.cmpi sle, %1, %6 : i32
    %8 = arith.extui %7 : i1 to i32
    %c0_i32_3 = arith.constant 0 : i32
    %9 = arith.cmpi ne, %8, %c0_i32_3 : i32
    scf.if %9 {
      %c0 = arith.constant 0 : index
      %c0_6 = arith.constant 0 : index
      %c0_7 = arith.constant 0 : index
      %13 = vector.load %arg4[%c0, %c0_6, %c0_7] : memref<1x8x32xf32, #tpu.memory_space<vmem>>, vector<1x8x32xf32>
      %14 = vector.shape_cast %13 : vector<1x8x32xf32> to vector<8x32xf32>
      %15 = arith.truncf %14 : vector<8x32xf32> to vector<8x32xbf16>
      %c0_8 = arith.constant 0 : index
      %c0_9 = arith.constant 0 : index
      %16 = vector.load %arg6[%c0_8, %c0_9] : memref<32x16xf32, #tpu.memory_space<vmem>>, vector<32x16xf32>
      %17 = arith.truncf %16 : vector<32x16xf32> to vector<32x16xbf16>
      %cst = arith.constant dense<0.000000e+00> : vector<8x16xf32>
      %18 = tpu.matmul %15, %17, %cst {dimension_numbers = #tpu.dot_dimension_numbers<[1], [0], [0], [1], [0, 0, 1, 1], [], []>} : vector<8x32xbf16>, vector<32x16xbf16>, vector<8x16xf32> -> vector<8x16xf32>
      %c0_10 = arith.constant 0 : index
      %c0_11 = arith.constant 0 : index
      %19 = vector.load %arg7[%c0_10, %c0_11] : memref<32x16xf32, #tpu.memory_space<vmem>>, vector<32x16xf32>
      %20 = arith.truncf %19 : vector<32x16xf32> to vector<32x16xbf16>
      %cst_12 = arith.constant dense<0.000000e+00> : vector<8x16xf32>
      %21 = tpu.matmul %15, %20, %cst_12 {dimension_numbers = #tpu.dot_dimension_numbers<[1], [0], [0], [1], [0, 0, 1, 1], [], []>} : vector<8x32xbf16>, vector<32x16xbf16>, vector<8x16xf32> -> vector<8x16xf32>
      %c0_13 = arith.constant 0 : index
      %c0_14 = arith.constant 0 : index
      %22 = vector.load %arg9[%c0_13, %c0_14] : memref<8x16xf32, #tpu.memory_space<vmem>>, vector<8x16xf32>
      %23 = arith.truncf %22 : vector<8x16xf32> to vector<8x16xbf16>
      %24 = arith.truncf %18 : vector<8x16xf32> to vector<8x16xbf16>
      %cst_15 = arith.constant dense<0.000000e+00> : vector<8x8xf32>
      %25 = tpu.matmul %23, %24, %cst_15 {dimension_numbers = #tpu.dot_dimension_numbers<[1], [1], [0], [0], [0, 0, 1, 0], [], []>} : vector<8x16xbf16>, vector<8x16xbf16>, vector<8x8xf32> -> vector<8x8xf32>
      %26 = tpu.iota {dimensions = array<i32: 0>} : vector<8x8xi32>
      %27 = vector.broadcast %0 : i32 to vector<8x8xi32>
      %28 = arith.addi %27, %26 : vector<8x8xi32>
      %29 = tpu.iota {dimensions = array<i32: 1>} : vector<8x8xi32>
      %30 = vector.broadcast %1 : i32 to vector<8x8xi32>
      %31 = arith.addi %30, %29 : vector<8x8xi32>
      %32 = arith.cmpi sle, %31, %28 : vector<8x8xi32>
      %cst_16 = arith.constant 0xFF800000 : f32
      %33 = vector.broadcast %cst_16 : f32 to vector<8x8xf32>
      %34 = arith.select %32, %25, %33 : vector<8x8xi1>, vector<8x8xf32>
      %c0_17 = arith.constant 0 : index
      %c0_18 = arith.constant 0 : index
      %35 = vector.load %arg10[%c0_17, %c0_18] : memref<8x1xf32, #tpu.memory_space<vmem>>, vector<8x1xf32>
      %cst_19 = arith.constant dense<0xFF800000> : vector<8xf32>
      %36 = vector.multi_reduction <maximumf>, %34, %cst_19 [1] : vector<8x8xf32> to vector<8xf32>
      %37 = vector.shape_cast %36 : vector<8xf32> to vector<8x1xf32>
      %38 = arith.maximumf %35, %37 : vector<8x1xf32>
      %39 = arith.subf %35, %38 : vector<8x1xf32>
      %40 = math.exp %39 : vector<8x1xf32>
      %41 = vector.broadcast %38 : vector<8x1xf32> to vector<8x8xf32>
      %42 = arith.subf %34, %41 : vector<8x8xf32>
      %43 = math.exp %42 : vector<8x8xf32>
      %c0_20 = arith.constant 0 : index
      %c0_21 = arith.constant 0 : index
      %44 = vector.load %arg11[%c0_20, %c0_21] : memref<8x1xf32, #tpu.memory_space<vmem>>, vector<8x1xf32>
      %45 = arith.mulf %40, %44 : vector<8x1xf32>
      %cst_22 = arith.constant dense<0.000000e+00> : vector<8xf32>
      %46 = vector.multi_reduction <add>, %43, %cst_22 [1] : vector<8x8xf32> to vector<8xf32>
      %47 = vector.shape_cast %46 : vector<8xf32> to vector<8x1xf32>
      %48 = arith.addf %45, %47 : vector<8x1xf32>
      %c0_23 = arith.constant 0 : index
      %c0_24 = arith.constant 0 : index
      %49 = vector.load %arg11[%c0_23, %c0_24] : memref<8x1xf32, #tpu.memory_space<vmem>>, vector<8x1xf32>
      tpu.vector_store %arg11[%c0_23, %c0_24], %48 {strides = array<i32>} : memref<8x1xf32, #tpu.memory_space<vmem>>, vector<8x1xf32>,
      %c0_25 = arith.constant 0 : index
      %c0_26 = arith.constant 0 : index
      %50 = vector.load %arg12[%c0_25, %c0_26] : memref<8x16xf32, #tpu.memory_space<vmem>>, vector<8x16xf32>
      %51 = vector.broadcast %40 : vector<8x1xf32> to vector<8x16xf32>
      %52 = arith.mulf %51, %50 : vector<8x16xf32>
      %53 = arith.truncf %43 : vector<8x8xf32> to vector<8x8xbf16>
      %54 = arith.truncf %21 : vector<8x16xf32> to vector<8x16xbf16>
      %cst_27 = arith.constant dense<0.000000e+00> : vector<8x16xf32>
      %55 = tpu.matmul %53, %54, %cst_27 {dimension_numbers = #tpu.dot_dimension_numbers<[1], [0], [0], [1], [0, 0, 1, 1], [], []>} : vector<8x8xbf16>, vector<8x16xbf16>, vector<8x16xf32> -> vector<8x16xf32>
      %56 = arith.addf %52, %55 : vector<8x16xf32>
      %c0_28 = arith.constant 0 : index
      %c0_29 = arith.constant 0 : index
      %57 = vector.load %arg12[%c0_28, %c0_29] : memref<8x16xf32, #tpu.memory_space<vmem>>, vector<8x16xf32>
      tpu.vector_store %arg12[%c0_28, %c0_29], %56 {strides = array<i32>} : memref<8x16xf32, #tpu.memory_space<vmem>>, vector<8x16xf32>,
      %c0_30 = arith.constant 0 : index
      %c0_31 = arith.constant 0 : index
      %58 = vector.load %arg10[%c0_30, %c0_31] : memref<8x1xf32, #tpu.memory_space<vmem>>, vector<8x1xf32>
      tpu.vector_store %arg10[%c0_30, %c0_31], %38 {strides = array<i32>} : memref<8x1xf32, #tpu.memory_space<vmem>>, vector<8x1xf32>,
    } else {
    }
    %c1_i32_4 = arith.constant 1 : i32
    %10 = arith.cmpi eq, %arg2, %c1_i32_4 : i32
    %11 = arith.extui %10 : i1 to i32
    %c0_i32_5 = arith.constant 0 : i32
    %12 = arith.cmpi ne, %11, %c0_i32_5 : i32
    scf.if %12 {
      %c0 = arith.constant 0 : index
      %c0_6 = arith.constant 0 : index
      %13 = vector.load %arg11[%c0, %c0_6] : memref<8x1xf32, #tpu.memory_space<vmem>>, vector<8x1xf32>
      %14 = tpu.reciprocal %13 {approx = true} : vector<8x1xf32> -> vector<8x1xf32>
      %c0_7 = arith.constant 0 : index
      %c0_8 = arith.constant 0 : index
      %15 = vector.load %arg12[%c0_7, %c0_8] : memref<8x16xf32, #tpu.memory_space<vmem>>, vector<8x16xf32>
      %16 = vector.broadcast %14 : vector<8x1xf32> to vector<8x16xf32>
      %17 = arith.mulf %15, %16 : vector<8x16xf32>
      %c0_9 = arith.constant 0 : index
      %c0_10 = arith.constant 0 : index
      %c0_11 = arith.constant 0 : index
      %18 = vector.load %arg8[%c0_9, %c0_10, %c0_11] : memref<1x8x16xf32, #tpu.memory_space<vmem>>, vector<1x8x16xf32>
      %19 = vector.shape_cast %18 : vector<1x8x16xf32> to vector<8x16xf32>
      %20 = vector.shape_cast %17 : vector<8x16xf32> to vector<1x8x16xf32>
      tpu.vector_store %arg8[%c0_9, %c0_10, %c0_11], %20 {strides = array<i32>} : memref<1x8x16xf32, #tpu.memory_space<vmem>>, vector<1x8x16xf32>,
    } else {
    }
    return
  }
  func.func @transform_0(%arg0: i32, %arg1: i32, %arg2: i32) -> (i32, i32, i32) {
    %c0_i32 = arith.constant 0 : i32
    %c0_i32_0 = arith.constant 0 : i32
    return %arg0, %arg1, %c0_i32 : i32, i32, i32
  }
  func.func @transform_1(%arg0: i32, %arg1: i32, %arg2: i32) -> (i32, i32, i32) {
    %c0_i32 = arith.constant 0 : i32
    %c0_i32_0 = arith.constant 0 : i32
    return %arg0, %arg2, %c0_i32 : i32, i32, i32
  }
  func.func @transform_2(%arg0: i32, %arg1: i32, %arg2: i32) -> (i32, i32) {
    %c0_i32 = arith.constant 0 : i32
    %c0_i32_0 = arith.constant 0 : i32
    %c0_i32_1 = arith.constant 0 : i32
    return %c0_i32, %c0_i32_0 : i32, i32
  }
  func.func @transform_3(%arg0: i32, %arg1: i32, %arg2: i32) -> (i32, i32) {
    %c0_i32 = arith.constant 0 : i32
    %c0_i32_0 = arith.constant 0 : i32
    %c0_i32_1 = arith.constant 0 : i32
    return %c0_i32, %c0_i32_0 : i32, i32
  }
  func.func @transform_4(%arg0: i32, %arg1: i32, %arg2: i32) -> (i32, i32) {
    %c0_i32 = arith.constant 0 : i32
    %c0_i32_0 = arith.constant 0 : i32
    %c0_i32_1 = arith.constant 0 : i32
    return %c0_i32, %c0_i32_0 : i32, i32
  }
  func.func @transform_5(%arg0: i32, %arg1: i32, %arg2: i32) -> (i32, i32, i32) {
    %c0_i32 = arith.constant 0 : i32
    %c0_i32_0 = arith.constant 0 : i32
    return %arg0, %arg1, %c0_i32 : i32, i32, i32
  }
}

</mosaic_0001>

<llo_original>
// kernel: tpu_custom_call.1
$region0: #{tpu_custom_call.1}
  #allocation0 [shape = 'u32[]', space=smem, size = 0x4, offset = 0x4, fixed_abs, tag = 'smem constant byte address 0x4 - core index']
  #allocation1 [shape = 'u32[144,128]{1,0:T(1,128)}', space=vmem, size = 0x12000, scoped, tag = 'internal scratch']
  #allocation2 [shape = 'f32[8,16]{1,0:T(8,128)}', space=vmem, size = 0x1000, scoped, tag = 'scratch operand']
  #allocation3 [shape = 'f32[8,1]{1,0:T(8,128)}', space=vmem, size = 0x1000, scoped, tag = 'scratch operand']
  #allocation4 [shape = 'f32[8,1]{1,0:T(8,128)}', space=vmem, size = 0x1000, scoped, tag = 'scratch operand']
  #allocation5 [shape = 'f32[8,16]{1,0:T(8,128)}', space=vmem, size = 0x1000, scoped, tag = 'scratch operand']
  %s0 = inlined_call_operand.vmem [shape: f32[2,16,32], index: 0, kind: input, shape index: {}]
  %s1 = inlined_call_operand.vmem [shape: f32[2,16,32], index: 1, kind: input, shape index: {}]
  %s2 = inlined_call_operand.vmem [shape: f32[32,16], index: 2, kind: input, shape index: {}]
  %s3 = inlined_call_operand.vmem [shape: f32[32,16], index: 3, kind: input, shape index: {}]
  %s4 = inlined_call_operand.vmem [shape: f32[32,16], index: 4, kind: input, shape index: {}]
  %s5 = inlined_call_operand.hbm [shape: f32[2,16,16], index: 5, kind: output, shape index: {}]
  %s6 = sld [smem:[#allocation0]]
  $region65: #{tpu_custom_call.1} parent=0
    _
  %s8 = ssub.s32 1, %s6
  %s9 = scalar_select 0, %s8, %s6
  $region1: #{tpu_custom_call.1} parent=0
    #allocation6 [shape = 'u8[8192]{0}', space=vmem, size = 0x2000, scoped, tag = 'output window, operand 0']
    #allocation7 [shape = 's32[2]{0}', space=sflag, size = 0x8, scoped, tag = 'scoped memory for tpu_custom_call.1']
    %10 = vsyncpa [#allocation7], 0
    %s11 = scalar_lea.sflag [#allocation7], 1
    %12 = vsyncpa %s11, 0
    loop: start=0, step=1, limit=10
    $region2: #{tpu_custom_call.1} parent=1 // loop_pre_header
      _
    $region3: #{tpu_custom_call.1} parent=1 // loop_header
      %s14 = sphi 0, %s18
      %p15 = scmp.ge.s32.totalorder %s14, 10
      %s21 = sphi 0, %s40
      %s22 = sphi 0, %s36
      %s23 = sphi 0, %s32
      %s24 = sphi 0, %s21
      %s25 = sphi 0, %s22
      %s26 = sphi 0, %s23
      %s27 = sphi 0, %s24
      %s28 = sphi 0, %s25
      %s29 = sphi 0, %s26
      %s45 = sphi 0, %s47
      %s48 = sphi 0, %s45
      %s49 = sphi 0, %s48
      %s65 = sphi 0, %s49
      %s73 = sphi 0, %s75
      %s76 = sphi 0, %s73
      %s77 = sphi 0, %s76
      %s93 = sphi 0, %s77
      %s97 = sphi 0, %s97
      %s99 = sphi 0, %s97
      %s100 = sphi 0, %s99
      %s114 = sphi 0, %s100
      %s118 = sphi 0, %s118
      %s120 = sphi 0, %s118
      %s121 = sphi 0, %s120
      %s135 = sphi 0, %s121
      %s139 = sphi 0, %s139
      %s141 = sphi 0, %s139
      %s142 = sphi 0, %s141
      %s156 = sphi 0, %s142
      %s164 = sphi 0, %s166
      %s167 = sphi 0, %s164
      %s168 = sphi 0, %s167
      %s184 = sphi 0, %s168
    $region4: #{tpu_custom_call.1} parent=1 // loop_header_branch
      %17 = sbr.rel (%p15) target = $region8
    $region5: #{tpu_custom_call.1} parent=1 // loop_body
      %s19 = ssub.s32 %s14, 1
      %s20 = ssub.s32 %s14, 2
      %s30 = sadd.s32 1, %s23
      %p31 = scmp.ge.s32.totalorder %s30, 2
      %s32 = scalar_select %p31, 0, %s30
      %s33 = sadd.s32 1, %s22
      %s34 = scalar_select %p31, %s33, %s22
      %p35 = scmp.ge.s32.totalorder %s34, 2
      %s36 = scalar_select %p35, 0, %s34
      %s37 = sadd.s32 1, %s21
      %s38 = scalar_select %p35, %s37, %s21
      %p39 = scmp.ge.s32.totalorder %s38, 2
      %s40 = scalar_select %p39, 0, %s38
      %s41 = ssub.s32 %s21, %s40
      %s42 = ssub.s32 %s22, %s36
      %s43 = sor.u32 %s41, %s42
      %p44 = scmp.eq.s32.totalorder %s43, 0
      %s46 = sadd.s32 %s45, 1
      %s47 = scalar_select %p44, %s45, %s46
      %p50 = pneg %p44
      %p51 = scmp.eq.s32.totalorder %s14, 7
      %p52 = por %p50, %p51
      %p53 = scmp.ne.s32.totalorder %s45, %s48
      %p54 = scmp.eq.s32.totalorder %s14, 0
      %p55 = por %p53, %p54
      %p56 = scmp.ne.s32.totalorder %s45, %s48
      %p57 = scmp.eq.s32.totalorder %s19, 7
      %p58 = por %p56, %p57
      %p59 = scmp.ne.s32.totalorder %s48, %s49
      %p60 = scmp.eq.s32.totalorder %s19, 0
      %p61 = por %p59, %p60
      %p62 = scmp.ne.s32.totalorder %s48, %s49
      %p63 = scmp.eq.s32.totalorder %s20, 7
      %p64 = por %p62, %p63
      %p66 = scmp.ne.s32.totalorder %s49, %s65
      %p67 = scmp.eq.s32.totalorder %s20, 0
      %p68 = por %p66, %p67
      %s69 = ssub.s32 %s21, %s40
      %s70 = ssub.s32 %s23, %s32
      %s71 = sor.u32 %s69, %s70
      %p72 = scmp.eq.s32.totalorder %s71, 0
      %s74 = sadd.s32 %s73, 1
      %s75 = scalar_select %p72, %s73, %s74
      %p78 = pneg %p72
      %p79 = scmp.eq.s32.totalorder %s14, 7
      %p80 = por %p78, %p79
      %p81 = scmp.ne.s32.totalorder %s73, %s76
      %p82 = scmp.eq.s32.totalorder %s14, 0
      %p83 = por %p81, %p82
      %p84 = scmp.ne.s32.totalorder %s73, %s76
      %p85 = scmp.eq.s32.totalorder %s19, 7
      %p86 = por %p84, %p85
      %p87 = scmp.ne.s32.totalorder %s76, %s77
      %p88 = scmp.eq.s32.totalorder %s19, 0
      %p89 = por %p87, %p88
      %p90 = scmp.ne.s32.totalorder %s76, %s77
      %p91 = scmp.eq.s32.totalorder %s20, 7
      %p92 = por %p90, %p91
      %p94 = scmp.ne.s32.totalorder %s77, %s93
      %p95 = scmp.eq.s32.totalorder %s20, 0
      %p96 = por %p94, %p95
      %s98 = sadd.s32 %s97, 1
      %p101 = scmp.eq.s32.totalorder %s14, 7
      %p102 = scmp.ne.s32.totalorder %s97, %s99
      %p103 = scmp.eq.s32.totalorder %s14, 0
      %p104 = por %p102, %p103
      %p105 = scmp.ne.s32.totalorder %s97, %s99
      %p106 = scmp.eq.s32.totalorder %s19, 7
      %p107 = por %p105, %p106
      %p108 = scmp.ne.s32.totalorder %s99, %s100
      %p109 = scmp.eq.s32.totalorder %s19, 0
      %p110 = por %p108, %p109
      %p111 = scmp.ne.s32.totalorder %s99, %s100
      %p112 = scmp.eq.s32.totalorder %s20, 7
      %p113 = por %p111, %p112
      %p115 = scmp.ne.s32.totalorder %s100, %s114
      %p116 = scmp.eq.s32.totalorder %s20, 0
      %p117 = por %p115, %p116
      %s119 = sadd.s32 %s118, 1
      %p122 = scmp.eq.s32.totalorder %s14, 7
      %p123 = scmp.ne.s32.totalorder %s118, %s120
      %p124 = scmp.eq.s32.totalorder %s14, 0
      %p125 = por %p123, %p124
      %p126 = scmp.ne.s32.totalorder %s118, %s120
      %p127 = scmp.eq.s32.totalorder %s19, 7
      %p128 = por %p126, %p127
      %p129 = scmp.ne.s32.totalorder %s120, %s121
      %p130 = scmp.eq.s32.totalorder %s19, 0
      %p131 = por %p129, %p130
      %p132 = scmp.ne.s32.totalorder %s120, %s121
      %p133 = scmp.eq.s32.totalorder %s20, 7
      %p134 = por %p132, %p133
      %p136 = scmp.ne.s32.totalorder %s121, %s135
      %p137 = scmp.eq.s32.totalorder %s20, 0
      %p138 = por %p136, %p137
      %s140 = sadd.s32 %s139, 1
      %p143 = scmp.eq.s32.totalorder %s14, 7
      %p144 = scmp.ne.s32.totalorder %s139, %s141
      %p145 = scmp.eq.s32.totalorder %s14, 0
      %p146 = por %p144, %p145
      %p147 = scmp.ne.s32.totalorder %s139, %s141
      %p148 = scmp.eq.s32.totalorder %s19, 7
      %p149 = por %p147, %p148
      %p150 = scmp.ne.s32.totalorder %s141, %s142
      %p151 = scmp.eq.s32.totalorder %s19, 0
      %p152 = por %p150, %p151
      %p153 = scmp.ne.s32.totalorder %s141, %s142
      %p154 = scmp.eq.s32.totalorder %s20, 7
      %p155 = por %p153, %p154
      %p157 = scmp.ne.s32.totalorder %s142, %s156
      %p158 = scmp.eq.s32.totalorder %s20, 0
      %p159 = por %p157, %p158
      %s160 = ssub.s32 %s21, %s40
      %s161 = ssub.s32 %s22, %s36
      %s162 = sor.u32 %s160, %s161
      %p163 = scmp.eq.s32.totalorder %s162, 0
      %s165 = sadd.s32 %s164, 1
      %s166 = scalar_select %p163, %s164, %s165
      %p169 = pneg %p163
      %p170 = scmp.eq.s32.totalorder %s14, 7
      %p171 = por %p169, %p170
      %p172 = scmp.ne.s32.totalorder %s164, %s167
      %p173 = scmp.eq.s32.totalorder %s14, 0
      %p174 = por %p172, %p173
      %p175 = scmp.ne.s32.totalorder %s164, %s167
      %p176 = scmp.eq.s32.totalorder %s19, 7
      %p177 = por %p175, %p176
      %p178 = scmp.ne.s32.totalorder %s167, %s168
      %p179 = scmp.eq.s32.totalorder %s19, 0
      %p180 = por %p178, %p179
      %p181 = scmp.ne.s32.totalorder %s167, %s168
      %p182 = scmp.eq.s32.totalorder %s20, 7
      %p183 = por %p181, %p182
      %p185 = scmp.ne.s32.totalorder %s168, %s184
      %p186 = scmp.eq.s32.totalorder %s20, 0
      %p187 = por %p185, %p186
      %p188 = scmp.le.s32.totalorder 1, %s14
      %p189 = scmp.lt.s32.totalorder %s14, 9
      %p190 = pnand %p188, %p189
      %p191 = pneg %p190
      // Predicated region
      $region9: #{tpu_custom_call.1} parent=5 // pred_check
        _
      $region10: #{tpu_custom_call.1} parent=5 // pred_check_branch
        %193 = sbr.rel (%p190) target = $region12
      $region11: #{tpu_custom_call.1} parent=5 // pred_region
        %s194 = ssub.s32 %s14, 1
        // Predicated region
        $region13: #{tpu_custom_call.1} parent=11 // pred_check
          %p195 = pneg %p110
        $region14: #{tpu_custom_call.1} parent=11 // pred_check_branch
          %197 = sbr.rel (%p195) target = $region16
        $region15: #{tpu_custom_call.1} parent=11 // pred_region
          _
        $region16: #{tpu_custom_call.1} parent=11 // pred_fallthru
          _
        // Predicated region
        $region17: #{tpu_custom_call.1} parent=11 // pred_check
          %p198 = pneg %p131
        $region18: #{tpu_custom_call.1} parent=11 // pred_check_branch
          %200 = sbr.rel (%p198) target = $region20
        $region19: #{tpu_custom_call.1} parent=11 // pred_region
          _
        $region20: #{tpu_custom_call.1} parent=11 // pred_fallthru
          _
        // Predicated region
        $region21: #{tpu_custom_call.1} parent=11 // pred_check
          %p201 = pneg %p152
        $region22: #{tpu_custom_call.1} parent=11 // pred_check_branch
          %203 = sbr.rel (%p201) target = $region24
        $region23: #{tpu_custom_call.1} parent=11 // pred_region
          _
        $region24: #{tpu_custom_call.1} parent=11 // pred_fallthru
          _
      $region12: #{tpu_custom_call.1} parent=5 // pred_fallthru
        _
      %p204 = scmp.lt.s32.totalorder %s14, 8
      // Predicated region
      $region25: #{tpu_custom_call.1} parent=5 // pred_check
        %p205 = pneg %p204
      $region26: #{tpu_custom_call.1} parent=5 // pred_check_branch
        %207 = sbr.rel (%p205) target = $region28
      $region27: #{tpu_custom_call.1} parent=5 // pred_region
        // Predicated region
        $region29: #{tpu_custom_call.1} parent=27 // pred_check
          %p208 = pneg %p55
        $region30: #{tpu_custom_call.1} parent=27 // pred_check_branch
          %210 = sbr.rel (%p208) target = $region32
        $region31: #{tpu_custom_call.1} parent=27 // pred_region
          %p211 = scmp.lt.s32.totalorder %s21, 1
          %s212 = scalar_select %p211, %s21, 1
          %p213 = scmp.lt.s32.totalorder %s22, 1
          %s214 = scalar_select %p213, %s22, 1
          %s215 = smul.addr %s212, 2
          %s216 = sadd.s32 %s214, %s215
          %s217 = smul.addr %s216, 8
          %s218 = scalar_lea.vmem %s0, %s217
        $region32: #{tpu_custom_call.1} parent=27 // pred_fallthru
          _
        // Predicated region
        $region33: #{tpu_custom_call.1} parent=27 // pred_check
          %p219 = pneg %p83
        $region34: #{tpu_custom_call.1} parent=27 // pred_check_branch
          %221 = sbr.rel (%p219) target = $region36
        $region35: #{tpu_custom_call.1} parent=27 // pred_region
          %p222 = scmp.lt.s32.totalorder %s21, 1
          %s223 = scalar_select %p222, %s21, 1
          %p224 = scmp.lt.s32.totalorder %s23, 1
          %s225 = scalar_select %p224, %s23, 1
          %s226 = smul.addr %s223, 2
          %s227 = sadd.s32 %s225, %s226
          %s228 = smul.addr %s227, 8
          %s229 = scalar_lea.vmem %s1, %s228
        $region36: #{tpu_custom_call.1} parent=27 // pred_fallthru
          _
      $region28: #{tpu_custom_call.1} parent=5 // pred_fallthru
        _
      %p230 = scmp.le.s32.totalorder 1, %s14
      %p231 = scmp.lt.s32.totalorder %s14, 9
      %p232 = pnand %p230, %p231
      %p233 = pneg %p232
      // Predicated region
      $region37: #{tpu_custom_call.1} parent=5 // pred_check
        _
      $region38: #{tpu_custom_call.1} parent=5 // pred_check_branch
        %235 = sbr.rel (%p232) target = $region40
      $region39: #{tpu_custom_call.1} parent=5 // pred_region
        %s236 = ssub.s32 %s14, 1
        %p237 = scmp.lt.s32.totalorder %s24, 1
        %s238 = scalar_select %p237, %s24, 1
        %p239 = scmp.lt.s32.totalorder %s25, 1
        %s240 = scalar_select %p239, %s25, 1
        %s241 = smul.addr %s238, 2
        %s242 = sadd.s32 %s240, %s241
        %s243 = smul.addr %s242, 8
        %s244 = scalar_lea.vmem %s0, %s243
        %p245 = pneg %p61
        %p246 = pneg %p58
        %p247 = scmp.lt.s32.totalorder %s24, 1
        %s248 = scalar_select %p247, %s24, 1
        %p249 = scmp.lt.s32.totalorder %s26, 1
        %s250 = scalar_select %p249, %s26, 1
        %s251 = smul.addr %s248, 2
        %s252 = sadd.s32 %s250, %s251
        %s253 = smul.addr %s252, 8
        %s254 = scalar_lea.vmem %s1, %s253
        %p255 = pneg %p89
        %p256 = pneg %p86
        %p257 = pneg %p110
        %p258 = pneg %p107
        %p259 = pneg %p131
        %p260 = pneg %p128
        %p261 = pneg %p152
        %p262 = pneg %p149
        %p263 = pneg %p180
        %p264 = pneg %p177
        %s265 = sand.u32 %s167, 1
        %s266 = scalar_lea.sflag [#allocation7], %s265
        %s267 = sand.u32 %s167, 1
        %s268 = smul.addr %s267, 8
        %s269 = scalar_lea.vmem [#allocation6], %s268
        %p270 = scmp.lt.s32.totalorder %s24, 1
        %s271 = scalar_select %p270, %s24, 1
        %p272 = scmp.lt.s32.totalorder %s25, 1
        %s273 = scalar_select %p272, %s25, 1
        %s274 = smul.addr %s271, 2
        %s275 = sadd.s32 %s273, %s274
        %s276 = smul.addr %s275, 8
        %s277 = scalar_lea.vmem %s0, %s276
        %p278 = scmp.lt.s32.totalorder %s24, 1
        %s279 = scalar_select %p278, %s24, 1
        %p280 = scmp.lt.s32.totalorder %s26, 1
        %s281 = scalar_select %p280, %s26, 1
        %s282 = smul.addr %s279, 2
        %s283 = sadd.s32 %s281, %s282
        %s284 = smul.addr %s283, 8
        %s285 = scalar_lea.vmem %s1, %s284
        %s287 = smul.u32 %s25, 8
        %s288 = smul.u32 %s26, 8
        %p289 = scmp.eq.s32.totalorder %s26, 0
        // Predicated region
        $region41: #{tpu_custom_call.1} parent=39 // pred_check
          %p290 = pneg %p289
        $region42: #{tpu_custom_call.1} parent=39 // pred_check_branch
          %292 = sbr.rel (%p290) target = $region44
        $region43: #{tpu_custom_call.1} parent=39 // pred_region
          %v293 = vld [vmem:[%s277] sm:$0xff]
          %v294 = vpack.c.bf16 %v293, %v293
          %v295 = vld [vmem:[%s2] sm:$0xff]
          %v296 = vld [vmem:[%s2 + $0x8] sm:$0xff]
          %v297 = vld [vmem:[%s2 + $0x10] sm:$0xff]
          %v298 = vld [vmem:[%s2 + $0x18] sm:$0xff]
          %v299 = vpack.c.bf16 %v296, %v295
          %v300 = vpack.c.bf16 %v298, %v297
          %vm301 = vcmask 261120
          %v303 = vsel %vm301, %v294, 0
          %305 = vmatprep.subr.bf16.mxu0 0
          %306 = vmatpush1.bf16.msra.mxu0 %v299
          %307 = vmatprep.subr.bf16.mxu0 0
          %308 = vmatpush1.bf16.msra.mxu0 %v300
          %309 = vmatprep.subr.bf16.mxu0 0
          %310 = vmatpush1.bf16.msra.mxu0 0
          %311 = vmatprep.subr.bf16.mxu0 0
          %312 = vmatpush1.bf16.msra.mxu0 0
          %313 = vmatprep.subr.bf16.mxu0 0
          %314 = vmatpush1.bf16.msra.mxu0 0
          %315 = vmatprep.subr.bf16.mxu0 0
          %316 = vmatpush1.bf16.msra.mxu0 0
          %317 = vmatprep.subr.bf16.mxu0 0
          %318 = vmatpush1.bf16.msra.mxu0 0
          %319 = vmatprep.subr.bf16.mxu0 0
          %320 = vmatpush1.bf16.msra.mxu0 0
          %321 = vmatprep.subr.bf16.mxu0 0
          %322 = vmatpush1.bf16.msra.mxu0 0
          %323 = vmatprep.subr.bf16.mxu0 0
          %324 = vmatpush1.bf16.msra.mxu0 0
          %325 = vmatprep.subr.bf16.mxu0 0
          %326 = vmatpush1.bf16.msra.mxu0 0
          %327 = vmatprep.subr.bf16.mxu0 0
          %328 = vmatpush1.bf16.msra.mxu0 0
          %329 = vmatprep.subr.bf16.mxu0 0
          %330 = vmatpush1.bf16.msra.mxu0 0
          %331 = vmatprep.subr.bf16.mxu0 0
          %332 = vmatpush1.bf16.msra.mxu0 0
          %333 = vmatprep.subr.bf16.mxu0 0
          %334 = vmatpush1.bf16.msra.mxu0 0
          %335 = vmatprep.subr.bf16.mxu0 0
          %336 = vmatpush1.bf16.msra.mxu0 0
          %337 = vmatprep.mubr.bf16.mxu0 0
          %338 = vmatmul.mubr.bf16.gmra.mrb[0].mxu0 %v303
          %v339 = vpop.f32.mrb[0].mxu0
          %v340 = vadd.f32 0.0, %v339
          %v341 = vpop.f32.mrb[0].mxu0
          %v342 = vpop.f32.mrb[0].mxu0
          %v343 = vpop.f32.mrb[0].mxu0
          %344 = vdwg.mxu0
          %v345 = vmul.f32 %v340, 0.17677669
          %vm346 = vcmask 130048
          %347 = vst.msk [vmem:[#allocation2] sm:$0xff] %vm346, %v345
          %vm348 = vcmask 7168
          %349 = vst.msk [vmem:[#allocation3] sm:$0xff] %vm348, -inf
          %350 = vst.msk [vmem:[#allocation4] sm:$0xff] %vm348, 0.0
          %351 = vst.msk [vmem:[#allocation5] sm:$0xff] %vm346, 0.0
        $region44: #{tpu_custom_call.1} parent=39 // pred_fallthru
          _
        %s352 = sadd.s32 %s287, 7
        %p353 = scmp.le.s32.totalorder %s288, %s352
        // Predicated region
        $region45: #{tpu_custom_call.1} parent=39 // pred_check
          %p354 = pneg %p353
        $region46: #{tpu_custom_call.1} parent=39 // pred_check_branch
          %356 = sbr.rel (%p354) target = $region48
        $region47: #{tpu_custom_call.1} parent=39 // pred_region
          %v357 = vld [vmem:[%s285] sm:$0xff]
          %v358 = vpack.c.bf16 %v357, %v357
          %v359 = vld [vmem:[%s3] sm:$0xff]
          %v360 = vld [vmem:[%s3 + $0x8] sm:$0xff]
          %v361 = vld [vmem:[%s3 + $0x10] sm:$0xff]
          %v362 = vld [vmem:[%s3 + $0x18] sm:$0xff]
          %v363 = vpack.c.bf16 %v360, %v359
          %v364 = vpack.c.bf16 %v362, %v361
          %vm365 = vcmask 261120
          %v367 = vsel %vm365, %v358, 0
          %369 = vmatprep.subr.bf16.mxu0 0
          %370 = vmatpush1.bf16.msra.mxu0 %v363
          %371 = vmatprep.subr.bf16.mxu0 0
          %372 = vmatpush1.bf16.msra.mxu0 %v364
          %373 = vmatprep.subr.bf16.mxu0 0
          %374 = vmatpush1.bf16.msra.mxu0 0
          %375 = vmatprep.subr.bf16.mxu0 0
          %376 = vmatpush1.bf16.msra.mxu0 0
          %377 = vmatprep.subr.bf16.mxu0 0
          %378 = vmatpush1.bf16.msra.mxu0 0
          %379 = vmatprep.subr.bf16.mxu0 0
          %380 = vmatpush1.bf16.msra.mxu0 0
          %381 = vmatprep.subr.bf16.mxu0 0
          %382 = vmatpush1.bf16.msra.mxu0 0
          %383 = vmatprep.subr.bf16.mxu0 0
          %384 = vmatpush1.bf16.msra.mxu0 0
          %385 = vmatprep.subr.bf16.mxu0 0
          %386 = vmatpush1.bf16.msra.mxu0 0
          %387 = vmatprep.subr.bf16.mxu0 0
          %388 = vmatpush1.bf16.msra.mxu0 0
          %389 = vmatprep.subr.bf16.mxu0 0
          %390 = vmatpush1.bf16.msra.mxu0 0
          %391 = vmatprep.subr.bf16.mxu0 0
          %392 = vmatpush1.bf16.msra.mxu0 0
          %393 = vmatprep.subr.bf16.mxu0 0
          %394 = vmatpush1.bf16.msra.mxu0 0
          %395 = vmatprep.subr.bf16.mxu0 0
          %396 = vmatpush1.bf16.msra.mxu0 0
          %397 = vmatprep.subr.bf16.mxu0 0
          %398 = vmatpush1.bf16.msra.mxu0 0
          %399 = vmatprep.subr.bf16.mxu0 0
          %400 = vmatpush1.bf16.msra.mxu0 0
          %401 = vmatprep.mubr.bf16.mxu0 0
          %402 = vmatmul.mubr.bf16.gmra.mrb[0].mxu0 %v367
          %v403 = vpop.f32.mrb[0].mxu0
          %v404 = vadd.f32 0.0, %v403
          %v405 = vpop.f32.mrb[0].mxu0
          %v406 = vpop.f32.mrb[0].mxu0
          %v407 = vpop.f32.mrb[0].mxu0
          %408 = vdwg.mxu0
          %v409 = vld [vmem:[%s4] sm:$0xff]
          %v410 = vld [vmem:[%s4 + $0x8] sm:$0xff]
          %v411 = vld [vmem:[%s4 + $0x10] sm:$0xff]
          %v412 = vld [vmem:[%s4 + $0x18] sm:$0xff]
          %v413 = vpack.c.bf16 %v410, %v409
          %v414 = vpack.c.bf16 %v412, %v411
          %415 = vmatprep.subr.bf16.mxu0 0
          %416 = vmatpush1.bf16.msra.mxu0 %v413
          %417 = vmatprep.subr.bf16.mxu0 0
          %418 = vmatpush1.bf16.msra.mxu0 %v414
          %419 = vmatprep.subr.bf16.mxu0 0
          %420 = vmatpush1.bf16.msra.mxu0 0
          %421 = vmatprep.subr.bf16.mxu0 0
          %422 = vmatpush1.bf16.msra.mxu0 0
          %423 = vmatprep.subr.bf16.mxu0 0
          %424 = vmatpush1.bf16.msra.mxu0 0
          %425 = vmatprep.subr.bf16.mxu0 0
          %426 = vmatpush1.bf16.msra.mxu0 0
          %427 = vmatprep.subr.bf16.mxu0 0
          %428 = vmatpush1.bf16.msra.mxu0 0
          %429 = vmatprep.subr.bf16.mxu0 0
          %430 = vmatpush1.bf16.msra.mxu0 0
          %431 = vmatprep.subr.bf16.mxu0 0
          %432 = vmatpush1.bf16.msra.mxu0 0
          %433 = vmatprep.subr.bf16.mxu0 0
          %434 = vmatpush1.bf16.msra.mxu0 0
          %435 = vmatprep.subr.bf16.mxu0 0
          %436 = vmatpush1.bf16.msra.mxu0 0
          %437 = vmatprep.subr.bf16.mxu0 0
          %438 = vmatpush1.bf16.msra.mxu0 0
          %439 = vmatprep.subr.bf16.mxu0 0
          %440 = vmatpush1.bf16.msra.mxu0 0
          %441 = vmatprep.subr.bf16.mxu0 0
          %442 = vmatpush1.bf16.msra.mxu0 0
          %443 = vmatprep.subr.bf16.mxu0 0
          %444 = vmatpush1.bf16.msra.mxu0 0
          %445 = vmatprep.subr.bf16.mxu0 0
          %446 = vmatpush1.bf16.msra.mxu0 0
          %447 = vmatprep.mubr.bf16.mxu0 0
          %448 = vmatmul.mubr.bf16.gmra.mrb[0].mxu0 %v367
          %v449 = vpop.f32.mrb[0].mxu0
          %v450 = vadd.f32 0.0, %v449
          %v451 = vpop.f32.mrb[0].mxu0
          %v452 = vpop.f32.mrb[0].mxu0
          %v453 = vpop.f32.mrb[0].mxu0
          %454 = vdwg.mxu0
          %v455 = vld [vmem:[#allocation2] sm:$0xff]
          %v456 = vpack.c.bf16 %v455, %v455
          %v457 = vpack.c.bf16 %v404, %v404
          %vm458 = vcmask 130048
          %v460 = vsel %vm458, %v456, 0
          %v463 = vsel %vm458, %v457, 0
          %465 = vmatprep.subr.bf16.mxu0 0
          %466 = vmatpush1.bf16.xpose.msra.mxu0 %v463
          %467 = vmatprep.subr.bf16.mxu0 0
          %468 = vmatpush1.bf16.xpose.msra.mxu0 0
          %469 = vmatprep.subr.bf16.mxu0 0
          %470 = vmatpush1.bf16.xpose.msra.mxu0 0
          %471 = vmatprep.subr.bf16.mxu0 0
          %472 = vmatpush1.bf16.xpose.msra.mxu0 0
          %473 = vmatprep.subr.bf16.mxu0 0
          %474 = vmatpush1.bf16.xpose.msra.mxu0 0
          %475 = vmatprep.subr.bf16.mxu0 0
          %476 = vmatpush1.bf16.xpose.msra.mxu0 0
          %477 = vmatprep.subr.bf16.mxu0 0
          %478 = vmatpush1.bf16.xpose.msra.mxu0 0
          %479 = vmatprep.subr.bf16.mxu0 0
          %480 = vmatpush1.bf16.xpose.msra.mxu0 0
          %481 = vmatprep.subr.bf16.mxu0 0
          %482 = vmatpush1.bf16.xpose.msra.mxu0 0
          %483 = vmatprep.subr.bf16.mxu0 0
          %484 = vmatpush1.bf16.xpose.msra.mxu0 0
          %485 = vmatprep.subr.bf16.mxu0 0
          %486 = vmatpush1.bf16.xpose.msra.mxu0 0
          %487 = vmatprep.subr.bf16.mxu0 0
          %488 = vmatpush1.bf16.xpose.msra.mxu0 0
          %489 = vmatprep.subr.bf16.mxu0 0
          %490 = vmatpush1.bf16.xpose.msra.mxu0 0
          %491 = vmatprep.subr.bf16.mxu0 0
          %492 = vmatpush1.bf16.xpose.msra.mxu0 0
          %493 = vmatprep.subr.bf16.mxu0 0
          %494 = vmatpush1.bf16.xpose.msra.mxu0 0
          %495 = vmatprep.subr.bf16.mxu0 0
          %496 = vmatpush1.bf16.xpose.msra.mxu0 0
          %497 = vmatprep.mubr.bf16.mxu0 0
          %498 = vmatmul.mubr.bf16.gmra.mrb[0].mxu0 %v460
          %v499 = vpop.f32.mrb[0].mxu0
          %v500 = vadd.f32 0.0, %v499
          %v501 = vpop.f32.mrb[0].mxu0
          %v502 = vpop.f32.mrb[0].mxu0
          %v503 = vpop.f32.mrb[0].mxu0
          %504 = vdwg.mxu0
          %v505 = vlaneseq
          %v506 = vshrl.u32 %v505, 7
          %v507 = vstv %s287
          %v508 = vadd.s32 %v507, %v506
          %v509 = vlaneseq
          %v510 = vand.u32 %v509, 127
          %v511 = vstv %s288
          %v512 = vadd.s32 %v511, %v510
          %vm513 = vcmp.le.s32.totalorder %v512, %v508
          %v514 = vsel %vm513, %v500, -inf
          %v515 = vld [vmem:[#allocation3] sm:$0xff]
          %vm516 = vcmask 64512
          %v517 = vsel %vm516, %v514, -inf
          %518 = vmax.xlane.f32.xlu0 %v517
          %v519 = vpop.xlane.xlu0 %518
          %v520 = vmax.f32 %v515, %v519
          %v521 = vsub.f32 %v515, %v520
          %v522 = vmul.f32 %v521, 1.442695
          %v523 = vpow.pop %v522
          %525 = vset.pattern.permute.xlu0 0
          %526 = vperm.xlu0 %525, %v520
          %v527 = vpop.permute.xlu0 %526
          %v529 = vsub.f32 %v514, %v527
          %v530 = vmul.f32 %v529, 1.442695
          %v531 = vpow.pop %v530
          %v532 = vld [vmem:[#allocation4] sm:$0xff]
          %v533 = vmul.f32 %v523, %v532
          %v534 = vsel %vm516, %v531, 0.0
          %535 = vadd.xlane.f32.xlu0 %v534
          %v536 = vpop.xlane.xlu0 %535
          %v537 = vadd.f32 %v533, %v536
          %vm538 = vcmask 7168
          %539 = vst.msk [vmem:[#allocation4] sm:$0xff] %vm538, %v537
          %v540 = vld [vmem:[#allocation5] sm:$0xff]
          %542 = vset.pattern.permute.xlu0 0
          %543 = vperm.xlu0 %542, %v523
          %v544 = vpop.permute.xlu0 %543
          %v546 = vmul.f32 %v544, %v540
          %v547 = vpack.c.bf16 %v531, %v531
          %v548 = vpack.c.bf16 %v450, %v450
          %v550 = vsel %vm516, %v547, 0
          %vm552 = vcmask 1043456
          %v554 = vsel %vm552, %v548, 0
          %556 = vmatprep.subr.bf16.mxu0 0
          %557 = vmatpush1.bf16.msra.mxu0 %v554
          %558 = vmatprep.subr.bf16.mxu0 0
          %559 = vmatpush1.bf16.msra.mxu0 0
          %560 = vmatprep.subr.bf16.mxu0 0
          %561 = vmatpush1.bf16.msra.mxu0 0
          %562 = vmatprep.subr.bf16.mxu0 0
          %563 = vmatpush1.bf16.msra.mxu0 0
          %564 = vmatprep.subr.bf16.mxu0 0
          %565 = vmatpush1.bf16.msra.mxu0 0
          %566 = vmatprep.subr.bf16.mxu0 0
          %567 = vmatpush1.bf16.msra.mxu0 0
          %568 = vmatprep.subr.bf16.mxu0 0
          %569 = vmatpush1.bf16.msra.mxu0 0
          %570 = vmatprep.subr.bf16.mxu0 0
          %571 = vmatpush1.bf16.msra.mxu0 0
          %572 = vmatprep.subr.bf16.mxu0 0
          %573 = vmatpush1.bf16.msra.mxu0 0
          %574 = vmatprep.subr.bf16.mxu0 0
          %575 = vmatpush1.bf16.msra.mxu0 0
          %576 = vmatprep.subr.bf16.mxu0 0
          %577 = vmatpush1.bf16.msra.mxu0 0
          %578 = vmatprep.subr.bf16.mxu0 0
          %579 = vmatpush1.bf16.msra.mxu0 0
          %580 = vmatprep.subr.bf16.mxu0 0
          %581 = vmatpush1.bf16.msra.mxu0 0
          %582 = vmatprep.subr.bf16.mxu0 0
          %583 = vmatpush1.bf16.msra.mxu0 0
          %584 = vmatprep.subr.bf16.mxu0 0
          %585 = vmatpush1.bf16.msra.mxu0 0
          %586 = vmatprep.subr.bf16.mxu0 0
          %587 = vmatpush1.bf16.msra.mxu0 0
          %588 = vmatprep.mubr.bf16.mxu0 0
          %589 = vmatmul.mubr.bf16.gmra.mrb[0].mxu0 %v550
          %v590 = vpop.f32.mrb[0].mxu0
          %v591 = vadd.f32 0.0, %v590
          %v592 = vpop.f32.mrb[0].mxu0
          %v593 = vpop.f32.mrb[0].mxu0
          %v594 = vpop.f32.mrb[0].mxu0
          %595 = vdwg.mxu0
          %v596 = vadd.f32 %v546, %v591
          %597 = vst.msk [vmem:[#allocation5] sm:$0xff] %vm458, %v596
          %598 = vst.msk [vmem:[#allocation3] sm:$0xff] %vm538, %v520
        $region48: #{tpu_custom_call.1} parent=39 // pred_fallthru
          _
        %p599 = scmp.eq.s32.totalorder %s26, 1
        // Predicated region
        $region49: #{tpu_custom_call.1} parent=39 // pred_check
          %p600 = pneg %p599
        $region50: #{tpu_custom_call.1} parent=39 // pred_check_branch
          %602 = sbr.rel (%p600) target = $region52
        $region51: #{tpu_custom_call.1} parent=39 // pred_region
          %v603 = vld [vmem:[#allocation4] sm:$0xff]
          %v604 = vrcp.pop %v603
          %v605 = vld [vmem:[#allocation5] sm:$0xff]
          %607 = vset.pattern.permute.xlu0 0
          %608 = vperm.xlu0 %607, %v604
          %v609 = vpop.permute.xlu0 %608
          %v611 = vmul.f32 %v605, %v609
          %vm612 = vcmask 130048
          %613 = vst.msk [vmem:[%s269] sm:$0xff] %vm612, %v611
        $region52: #{tpu_custom_call.1} parent=39 // pred_fallthru
          _
        %s614 = sand.u32 %s167, 1
        %s615 = scalar_lea.sflag [#allocation7], %s614
        %s616 = sand.u32 %s167, 1
        %s617 = smul.addr %s616, 8
        %s618 = scalar_lea.vmem [#allocation6], %s617
        // Predicated region
        $region53: #{tpu_custom_call.1} parent=39 // pred_check
          %p619 = pneg %p177
        $region54: #{tpu_custom_call.1} parent=39 // pred_check_branch
          %621 = sbr.rel (%p619) target = $region56
        $region55: #{tpu_custom_call.1} parent=39 // pred_region
          %s623 = ssub.s32 128, 128
          %624 = vsyncadd %s615, %s623
          %s625 = smul.addr %s24, 2
          %s626 = sadd.s32 %s25, %s625
          %s627 = smul.addr %s626, 128
          %s628 = scalar_lea.hbm %s5, %s627
          %s630 = sshll.u32 %s618, 4
          %s631 = int_to_ptr.vmem [resolvable:$true] %s630
          %633 = dma.vmem_to_hbm [thread:$0]  %s631, 128, %s628, %s615
        $region56: #{tpu_custom_call.1} parent=39 // pred_fallthru
          _
      $region40: #{tpu_custom_call.1} parent=5 // pred_fallthru
        _
      %p634 = scmp.le.s32.totalorder 2, %s14
      // Predicated region
      $region57: #{tpu_custom_call.1} parent=5 // pred_check
        %p635 = pneg %p634
      $region58: #{tpu_custom_call.1} parent=5 // pred_check_branch
        %637 = sbr.rel (%p635) target = $region60
      $region59: #{tpu_custom_call.1} parent=5 // pred_region
        %s638 = ssub.s32 %s14, 2
        // Predicated region
        $region61: #{tpu_custom_call.1} parent=59 // pred_check
          %p639 = pneg %p183
        $region62: #{tpu_custom_call.1} parent=59 // pred_check_branch
          %641 = sbr.rel (%p639) target = $region64
        $region63: #{tpu_custom_call.1} parent=59 // pred_region
          %s642 = sand.u32 %s168, 1
          %s643 = scalar_lea.sflag [#allocation7], %s642
          %s644 = sand.u32 %s168, 1
          %s645 = smul.addr %s644, 8
          %s646 = scalar_lea.vmem [#allocation6], %s645
          %647 = dma.done %s643, 128
        $region64: #{tpu_custom_call.1} parent=59 // pred_fallthru
          _
      $region60: #{tpu_custom_call.1} parent=5 // pred_fallthru
        _
    $region6: #{tpu_custom_call.1} parent=1 // loop_footer
      %s18 = sadd.s32 1, %s14
    $region7: #{tpu_custom_call.1} parent=1 // loop_footer_branch
      %13 = sbr.rel target = $region3
    $region8: #{tpu_custom_call.1} parent=1 // loop_exit
      _
    %648 = vsyncpa [#allocation7], 1
    %s649 = scalar_lea.sflag [#allocation7], 1
    %650 = vsyncpa %s649, 1

</llo_original>
